<compile_context>
chip_gen: v6e
topology: v6e:2x2x1
jax: 0.10.0
libtpu: 0.0.40
codegen_flags: <defaults>
</compile_context>

<pallas_src>
import jax
import jax.numpy as jnp
from jax.experimental import pallas as pl
from jax.experimental.pallas import tpu as pltpu

_LANE = 128
_SUBLANE_BF16 = 16          # bf16 packs 16 rows per vreg
_VMEM_BUDGET = 24 << 20     # safe on v7x (64 MiB phys / 32 MiB default scoped)


def _round_up(x, m):
    return (x + m - 1) // m * m


def _make_mlgn_kernel(num_feats):
    """Kernel over `num_feats` CLS-feature refs (each (bb, H))."""

    def kernel(*refs):
        x_refs = refs[:num_feats]        # each (bb, H), compute dtype
        w_ref = refs[num_feats]          # (F, H, Lp), compute dtype (resident)
        b_ref = refs[num_feats + 1]      # (1, Lp) float32 (resident)
        o_ref = refs[num_feats + 2]      # (bb, Lp) float32

        acc = None
        for f in range(num_feats):       # unrolled at trace time (F is small)
            part = jnp.dot(x_refs[f][...], w_ref[f],
                           preferred_element_type=jnp.float32)
            acc = part if acc is None else acc + part
        o_ref[...] = (acc + b_ref[...]).astype(o_ref.dtype)

    return kernel


def prepare_mlgn_params(weight, bias, feature_layers, bert_hidden_size,
                        compute_dtype=jnp.bfloat16):
    """One-time param prep (hoisted out of the per-call path).

    weight: (L, F*H) PyTorch Linear layout; bias: (L,).
    Returns (w3, b2, L): w3 is (F, H, Lp) compute_dtype whose row-block f
    matches torch.cat order (layer -(f+1)); b2 is (1, Lp) float32.
    """
    L, FH = weight.shape
    F, H = feature_layers, bert_hidden_size
    assert FH == F * H
    Lp = _round_up(L, _LANE)
    w = jnp.pad(weight.T.astype(compute_dtype), ((0, 0), (0, Lp - L)))
    w3 = w.reshape(F, H, Lp)
    b2 = jnp.pad(bias.astype(jnp.float32), (0, Lp - L)).reshape(1, Lp)
    return w3, b2, L


def _pick_block_b(B, F, H, Lp, itemsize):
    """Largest batch tile that (a) fits the v7x-safe VMEM budget with default
    double-buffering (2x resident weight counted), (b) is a multiple of 16
    (bf16 packing), and (c) gives an even grid so both v7x TensorCores stay
    balanced.  On v5e/v6e (1 TC, 128 MiB VMEM) this is simply a fat tile."""
    if B <= _SUBLANE_BF16:
        return B                                            # one tiny grid step
    fixed = 2 * F * H * Lp * itemsize + 2 * Lp * 4          # 2x resident W + bias
    per_row = 2 * F * H * itemsize + 2 * Lp * 4             # 2x feat rows + f32 out
    cap = max((_VMEM_BUDGET - fixed) // per_row, _SUBLANE_BF16)
    target = _round_up(pl.cdiv(B, 2), _SUBLANE_BF16)        # one step per TC (v7x)
    bb = min(int(cap), target)
    return max(_SUBLANE_BF16, (bb // _SUBLANE_BF16) * _SUBLANE_BF16)


def mlgn_forward(hidden_states, w3, b2, label_number, *, block_b=None):
    """hidden_states: list of (B, S, H) arrays; w3/b2 from prepare_mlgn_params."""
    F, H, Lp = w3.shape
    B = hidden_states[0].shape[0]
    compute_dtype = w3.dtype
    itemsize = jnp.dtype(compute_dtype).itemsize

    # CLS gather per layer in the wrapper: only B*H elements per layer move
    # (no relayout of the full (B,S,H) states, no (B, F*H) concat in HBM).
    feats = [hidden_states[-i][:, 0, :].astype(compute_dtype)
             for i in range(1, F + 1)]

    # TODO(synk): Dropout(p=0.5) is identity in eval mode; training-mode masking
    # would use pltpu.prng_seed / pltpu.prng_random_bits on the (bb, H) tiles
    # inside the kernel rather than a separate HBM-materializing JAX op.

    if block_b is None:
        block_b = _pick_block_b(B, F, H, Lp, itemsize)
    block_b = min(block_b, B)

    grid = (pl.cdiv(B, block_b),)

    in_specs = [pl.BlockSpec((block_b, H), lambda i: (i, 0)) for _ in range(F)]
    in_specs.append(pl.BlockSpec((F, H, Lp), lambda i: (0, 0, 0)))  # W resident
    in_specs.append(pl.BlockSpec((1, Lp), lambda i: (0, 0)))        # bias resident
    out_spec = pl.BlockSpec((block_b, Lp), lambda i: (i, 0))

    cost = pl.CostEstimate(
        flops=2 * B * F * H * Lp,
        transcendentals=0,
        bytes_accessed=B * F * H * itemsize + F * H * Lp * itemsize + B * Lp * 4,
    )

    out_padded = pl.pallas_call(
        _make_mlgn_kernel(F),
        out_shape=jax.ShapeDtypeStruct((B, Lp), jnp.float32),
        grid=grid,
        in_specs=in_specs,
        out_specs=out_spec,
        compiler_params=pltpu.CompilerParams(
            dimension_semantics=("parallel",),   # batch tiles shard across v7x TCs
            vmem_limit_bytes=64 << 20,
        ),
        cost_estimate=cost,
    )(*feats, w3, b2)

    return out_padded[:, :label_number]


if __name__ == "__main__":
    # Small, module-consistent shapes (BERT-tiny hidden size = 128).
    batch = 24
    seq = 8
    bert_hidden_size = 128
    num_hidden_layers = 6
    feature_layers = 4
    label_number = 16

    key = jax.random.PRNGKey(0)
    keys = jax.random.split(key, num_hidden_layers + 2)

    # Synthetic BERT hidden states, bf16 (halves HBM bytes on the feature reads).
    hidden_states = [
        jax.random.normal(keys[i], (batch, seq, bert_hidden_size),
                          dtype=jnp.float32).astype(jnp.bfloat16)
        for i in range(num_hidden_layers)
    ]

    # Linear params (PyTorch shapes: weight (L, F*H), bias (L,)).
    in_features = feature_layers * bert_hidden_size
    bound = 1.0 / (in_features ** 0.5)
    weight = jax.random.uniform(
        keys[-2], (label_number, in_features),
        minval=-bound, maxval=bound, dtype=jnp.float32)
    bias = jax.random.uniform(
        keys[-1], (label_number,), minval=-bound, maxval=bound, dtype=jnp.float32)

    # One-time param prep (padded, transposed, per-layer-sliced weight).
    w3, b2, _ = prepare_mlgn_params(weight, bias, feature_layers,
                                    bert_hidden_size, compute_dtype=jnp.bfloat16)

    out = mlgn_forward(hidden_states, w3, b2, label_number)
    out = jax.block_until_ready(out)
    assert out.shape == (batch, label_number)

    # Reference: same bf16-quantized operands, full-precision f32 math.
    x_cat = jnp.concatenate(
        [hidden_states[-i][:, 0, :] for i in range(1, feature_layers + 1)],
        axis=-1).astype(jnp.float32)
    w_q = weight.astype(jnp.bfloat16).astype(jnp.float32)
    ref = jnp.dot(x_cat, w_q.T, precision=jax.lax.Precision.HIGHEST) + bias
    assert jnp.allclose(out, ref, atol=2e-3, rtol=2e-3), \
        float(jnp.max(jnp.abs(out - ref)))

    print("KERNEL_OK")
</pallas_src>

<mosaic_0001>
module attributes {stable_mosaic.version = 11 : i64} {
  func.func @kernel(%arg0: i32, %arg1: memref<16x128xbf16, #tpu.memory_space<vmem>>, %arg2: memref<16x128xbf16, #tpu.memory_space<vmem>>, %arg3: memref<16x128xbf16, #tpu.memory_space<vmem>>, %arg4: memref<16x128xbf16, #tpu.memory_space<vmem>>, %arg5: memref<4x128x128xbf16, #tpu.memory_space<vmem>>, %arg6: memref<1x128xf32, #tpu.memory_space<vmem>>, %arg7: memref<16x128xf32, #tpu.memory_space<vmem>>) attributes {dimension_semantics = [#tpu.dimension_semantics<parallel>], iteration_bounds = array<i64: 2>, scalar_prefetch = 0 : i64, scratch_operands = 0 : i64, tpu.core_type = #tpu.core_type<tc>, window_params = [{transform_indices = @transform_0, window_bounds = array<i64: 16, 128>}, {transform_indices = @transform_1, window_bounds = array<i64: 16, 128>}, {transform_indices = @transform_2, window_bounds = array<i64: 16, 128>}, {transform_indices = @transform_3, window_bounds = array<i64: 16, 128>}, {pipeline_mode = #tpu.pipeline_mode<synchronous>, transform_indices = @transform_4, window_bounds = array<i64: 4, 128, 128>}, {pipeline_mode = #tpu.pipeline_mode<synchronous>, transform_indices = @transform_5, window_bounds = array<i64: 1, 128>}, {transform_indices = @transform_6, window_bounds = array<i64: 16, 128>}]} {
    %c0 = arith.constant 0 : index
    %c0_0 = arith.constant 0 : index
    %0 = vector.load %arg1[%c0, %c0_0] : memref<16x128xbf16, #tpu.memory_space<vmem>>, vector<16x128xbf16>
    %c0_1 = arith.constant 0 : index
    %c0_2 = arith.constant 0 : index
    %c0_3 = arith.constant 0 : index
    %1 = vector.load %arg5[%c0_1, %c0_2, %c0_3] : memref<4x128x128xbf16, #tpu.memory_space<vmem>>, vector<1x128x128xbf16>
    %2 = vector.shape_cast %1 : vector<1x128x128xbf16> to vector<128x128xbf16>
    %cst = arith.constant dense<0.000000e+00> : vector<16x128xf32>
    %3 = tpu.matmul %0, %2, %cst {dimension_numbers = #tpu.dot_dimension_numbers<[1], [0], [0], [1], [0, 0, 1, 1], [], []>} : vector<16x128xbf16>, vector<128x128xbf16>, vector<16x128xf32> -> vector<16x128xf32>
    %c0_4 = arith.constant 0 : index
    %c0_5 = arith.constant 0 : index
    %4 = vector.load %arg2[%c0_4, %c0_5] : memref<16x128xbf16, #tpu.memory_space<vmem>>, vector<16x128xbf16>
    %c1 = arith.constant 1 : index
    %c0_6 = arith.constant 0 : index
    %c0_7 = arith.constant 0 : index
    %5 = vector.load %arg5[%c1, %c0_6, %c0_7] : memref<4x128x128xbf16, #tpu.memory_space<vmem>>, vector<1x128x128xbf16>
    %6 = vector.shape_cast %5 : vector<1x128x128xbf16> to vector<128x128xbf16>
    %cst_8 = arith.constant dense<0.000000e+00> : vector<16x128xf32>
    %7 = tpu.matmul %4, %6, %cst_8 {dimension_numbers = #tpu.dot_dimension_numbers<[1], [0], [0], [1], [0, 0, 1, 1], [], []>} : vector<16x128xbf16>, vector<128x128xbf16>, vector<16x128xf32> -> vector<16x128xf32>
    %8 = arith.addf %3, %7 : vector<16x128xf32>
    %c0_9 = arith.constant 0 : index
    %c0_10 = arith.constant 0 : index
    %9 = vector.load %arg3[%c0_9, %c0_10] : memref<16x128xbf16, #tpu.memory_space<vmem>>, vector<16x128xbf16>
    %c2 = arith.constant 2 : index
    %c0_11 = arith.constant 0 : index
    %c0_12 = arith.constant 0 : index
    %10 = vector.load %arg5[%c2, %c0_11, %c0_12] : memref<4x128x128xbf16, #tpu.memory_space<vmem>>, vector<1x128x128xbf16>
    %11 = vector.shape_cast %10 : vector<1x128x128xbf16> to vector<128x128xbf16>
    %cst_13 = arith.constant dense<0.000000e+00> : vector<16x128xf32>
    %12 = tpu.matmul %9, %11, %cst_13 {dimension_numbers = #tpu.dot_dimension_numbers<[1], [0], [0], [1], [0, 0, 1, 1], [], []>} : vector<16x128xbf16>, vector<128x128xbf16>, vector<16x128xf32> -> vector<16x128xf32>
    %13 = arith.addf %8, %12 : vector<16x128xf32>
    %c0_14 = arith.constant 0 : index
    %c0_15 = arith.constant 0 : index
    %14 = vector.load %arg4[%c0_14, %c0_15] : memref<16x128xbf16, #tpu.memory_space<vmem>>, vector<16x128xbf16>
    %c3 = arith.constant 3 : index
    %c0_16 = arith.constant 0 : index
    %c0_17 = arith.constant 0 : index
    %15 = vector.load %arg5[%c3, %c0_16, %c0_17] : memref<4x128x128xbf16, #tpu.memory_space<vmem>>, vector<1x128x128xbf16>
    %16 = vector.shape_cast %15 : vector<1x128x128xbf16> to vector<128x128xbf16>
    %cst_18 = arith.constant dense<0.000000e+00> : vector<16x128xf32>
    %17 = tpu.matmul %14, %16, %cst_18 {dimension_numbers = #tpu.dot_dimension_numbers<[1], [0], [0], [1], [0, 0, 1, 1], [], []>} : vector<16x128xbf16>, vector<128x128xbf16>, vector<16x128xf32> -> vector<16x128xf32>
    %18 = arith.addf %13, %17 : vector<16x128xf32>
    %c0_19 = arith.constant 0 : index
    %c0_20 = arith.constant 0 : index
    %19 = vector.load %arg6[%c0_19, %c0_20] : memref<1x128xf32, #tpu.memory_space<vmem>>, vector<1x128xf32>
    %20 = vector.broadcast %19 : vector<1x128xf32> to vector<16x128xf32>
    %21 = arith.addf %18, %20 : vector<16x128xf32>
    %c0_21 = arith.constant 0 : index
    %c0_22 = arith.constant 0 : index
    %22 = vector.load %arg7[%c0_21, %c0_22] : memref<16x128xf32, #tpu.memory_space<vmem>>, vector<16x128xf32>
    tpu.vector_store %arg7[%c0_21, %c0_22], %21 {strides = array<i32>} : memref<16x128xf32, #tpu.memory_space<vmem>>, vector<16x128xf32>,
    return
  }
  func.func @transform_0(%arg0: i32) -> (i32, i32) {
    %c0_i32 = arith.constant 0 : i32
    %c0_i32_0 = arith.constant 0 : i32
    return %arg0, %c0_i32 : i32, i32
  }
  func.func @transform_1(%arg0: i32) -> (i32, i32) {
    %c0_i32 = arith.constant 0 : i32
    %c0_i32_0 = arith.constant 0 : i32
    return %arg0, %c0_i32 : i32, i32
  }
  func.func @transform_2(%arg0: i32) -> (i32, i32) {
    %c0_i32 = arith.constant 0 : i32
    %c0_i32_0 = arith.constant 0 : i32
    return %arg0, %c0_i32 : i32, i32
  }
  func.func @transform_3(%arg0: i32) -> (i32, i32) {
    %c0_i32 = arith.constant 0 : i32
    %c0_i32_0 = arith.constant 0 : i32
    return %arg0, %c0_i32 : i32, i32
  }
  func.func @transform_4(%arg0: i32) -> (i32, i32, i32) {
    %c0_i32 = arith.constant 0 : i32
    %c0_i32_0 = arith.constant 0 : i32
    %c0_i32_1 = arith.constant 0 : i32
    %c0_i32_2 = arith.constant 0 : i32
    return %c0_i32, %c0_i32_0, %c0_i32_1 : i32, i32, i32
  }
  func.func @transform_5(%arg0: i32) -> (i32, i32) {
    %c0_i32 = arith.constant 0 : i32
    %c0_i32_0 = arith.constant 0 : i32
    %c0_i32_1 = arith.constant 0 : i32
    return %c0_i32, %c0_i32_0 : i32, i32
  }
  func.func @transform_6(%arg0: i32) -> (i32, i32) {
    %c0_i32 = arith.constant 0 : i32
    %c0_i32_0 = arith.constant 0 : i32
    return %arg0, %c0_i32 : i32, i32
  }
}

</mosaic_0001>

<llo_original>
// kernel: tpu_custom_call.1
$region0: #{tpu_custom_call.1}
  #allocation0 [shape = 'u32[]', space=smem, size = 0x4, offset = 0x4, fixed_abs, tag = 'smem constant byte address 0x4 - core index']
  #allocation1 [shape = 'u32[144,128]{1,0:T(1,128)}', space=vmem, size = 0x12000, scoped, tag = 'internal scratch']
  %s0 = inlined_call_operand.hbm [shape: bf16[24,128], index: 0, kind: input, shape index: {}]
  %s1 = inlined_call_operand.hbm [shape: bf16[24,128], index: 1, kind: input, shape index: {}]
  %s2 = inlined_call_operand.hbm [shape: bf16[24,128], index: 2, kind: input, shape index: {}]
  %s3 = inlined_call_operand.hbm [shape: bf16[24,128], index: 3, kind: input, shape index: {}]
  %s4 = inlined_call_operand.hbm [shape: bf16[4,128,128], index: 4, kind: input, shape index: {}]
  %s5 = inlined_call_operand.vmem [shape: f32[1,128], index: 5, kind: input, shape index: {}]
  %s6 = inlined_call_operand.hbm [shape: f32[24,128], index: 6, kind: output, shape index: {}]
  %s7 = sld [smem:[#allocation0]]
  $region77: #{tpu_custom_call.1} parent=0
    _
  %s9 = ssub.s32 1, %s7
  %s10 = scalar_select 0, %s9, %s7
  $region1: #{tpu_custom_call.1} parent=0
    #allocation2 [shape = 'u8[8192]{0}', space=vmem, size = 0x2000, scoped, tag = 'input window, operand 0']
    #allocation3 [shape = 's32[2]{0}', space=sflag, size = 0x8, scoped, tag = 'scoped memory for tpu_custom_call.1']
    #allocation4 [shape = 's32[2]{0}', space=sflag, size = 0x8, scoped, tag = 'scoped memory for tpu_custom_call.1']
    #allocation5 [shape = 'u8[8192]{0}', space=vmem, size = 0x2000, scoped, tag = 'input window, operand 1']
    #allocation6 [shape = 's32[2]{0}', space=sflag, size = 0x8, scoped, tag = 'scoped memory for tpu_custom_call.1']
    #allocation7 [shape = 'u8[8192]{0}', space=vmem, size = 0x2000, scoped, tag = 'input window, operand 2']
    #allocation8 [shape = 'u8[8192]{0}', space=vmem, size = 0x2000, scoped, tag = 'input window, operand 3']
    #allocation9 [shape = 's32[2]{0}', space=sflag, size = 0x8, scoped, tag = 'scoped memory for tpu_custom_call.1']
    #allocation10 [shape = 'u8[131072]{0}', space=vmem, size = 0x20000, scoped, tag = 'input window, operand 4, single buffered']
    #allocation11 [shape = 'u8[16384]{0}', space=vmem, size = 0x4000, scoped, tag = 'output window, operand 0']
    %11 = vsyncpa [#allocation3], 0
    %s12 = scalar_lea.sflag [#allocation3], 1
    %13 = vsyncpa %s12, 0
    %14 = vsyncpa [#allocation6], 0
    %s15 = scalar_lea.sflag [#allocation6], 1
    %16 = vsyncpa %s15, 0
    %17 = vsyncpa [#allocation9], 0
    %s18 = scalar_lea.sflag [#allocation9], 1
    %19 = vsyncpa %s18, 0
    %20 = vsyncpa [#allocation4], 0
    %s21 = scalar_lea.sflag [#allocation4], 1
    %22 = vsyncpa %s21, 0
    loop: start=0, step=1, limit=4
    $region2: #{tpu_custom_call.1} parent=1 // loop_pre_header
      _
    $region3: #{tpu_custom_call.1} parent=1 // loop_header
      %s24 = sphi 0, %s28
      %p25 = scmp.ge.s32.totalorder %s24, 4
      %s34 = sphi 0, %s36
      %s37 = sphi 0, %s34
      %s38 = sphi 0, %s37
      %s54 = sphi 0, %s38
      %s60 = sphi 0, %s62
      %s63 = sphi 0, %s60
      %s64 = sphi 0, %s63
      %s80 = sphi 0, %s64
      %s86 = sphi 0, %s88
      %s89 = sphi 0, %s86
      %s90 = sphi 0, %s89
      %s106 = sphi 0, %s90
      %s112 = sphi 0, %s114
      %s115 = sphi 0, %s112
      %s116 = sphi 0, %s115
      %s132 = sphi 0, %s116
      %s136 = sphi 0, %s136
      %s138 = sphi 0, %s136
      %s139 = sphi 0, %s138
      %s153 = sphi 0, %s139
      %s157 = sphi 0, %s157
      %s159 = sphi 0, %s157
      %s160 = sphi 0, %s159
      %s174 = sphi 0, %s160
      %s180 = sphi 0, %s182
      %s183 = sphi 0, %s180
      %s184 = sphi 0, %s183
      %s200 = sphi 0, %s184
    $region4: #{tpu_custom_call.1} parent=1 // loop_header_branch
      %27 = sbr.rel (%p25) target = $region8
    $region5: #{tpu_custom_call.1} parent=1 // loop_body
      %s29 = ssub.s32 %s24, 1
      %s30 = ssub.s32 %s24, 2
      %s31 = sadd.s32 %s24, 1
      %s32 = ssub.s32 %s24, %s31
      %p33 = scmp.eq.s32.totalorder %s32, 0
      %s35 = sadd.s32 %s34, 1
      %s36 = scalar_select %p33, %s34, %s35
      %p39 = pneg %p33
      %p40 = scmp.eq.s32.totalorder %s24, 1
      %p41 = por %p39, %p40
      %p42 = scmp.ne.s32.totalorder %s34, %s37
      %p43 = scmp.eq.s32.totalorder %s24, 0
      %p44 = por %p42, %p43
      %p45 = scmp.ne.s32.totalorder %s34, %s37
      %p46 = scmp.eq.s32.totalorder %s29, 1
      %p47 = por %p45, %p46
      %p48 = scmp.ne.s32.totalorder %s37, %s38
      %p49 = scmp.eq.s32.totalorder %s29, 0
      %p50 = por %p48, %p49
      %p51 = scmp.ne.s32.totalorder %s37, %s38
      %p52 = scmp.eq.s32.totalorder %s30, 1
      %p53 = por %p51, %p52
      %p55 = scmp.ne.s32.totalorder %s38, %s54
      %p56 = scmp.eq.s32.totalorder %s30, 0
      %p57 = por %p55, %p56
      %s58 = ssub.s32 %s24, %s31
      %p59 = scmp.eq.s32.totalorder %s58, 0
      %s61 = sadd.s32 %s60, 1
      %s62 = scalar_select %p59, %s60, %s61
      %p65 = pneg %p59
      %p66 = scmp.eq.s32.totalorder %s24, 1
      %p67 = por %p65, %p66
      %p68 = scmp.ne.s32.totalorder %s60, %s63
      %p69 = scmp.eq.s32.totalorder %s24, 0
      %p70 = por %p68, %p69
      %p71 = scmp.ne.s32.totalorder %s60, %s63
      %p72 = scmp.eq.s32.totalorder %s29, 1
      %p73 = por %p71, %p72
      %p74 = scmp.ne.s32.totalorder %s63, %s64
      %p75 = scmp.eq.s32.totalorder %s29, 0
      %p76 = por %p74, %p75
      %p77 = scmp.ne.s32.totalorder %s63, %s64
      %p78 = scmp.eq.s32.totalorder %s30, 1
      %p79 = por %p77, %p78
      %p81 = scmp.ne.s32.totalorder %s64, %s80
      %p82 = scmp.eq.s32.totalorder %s30, 0
      %p83 = por %p81, %p82
      %s84 = ssub.s32 %s24, %s31
      %p85 = scmp.eq.s32.totalorder %s84, 0
      %s87 = sadd.s32 %s86, 1
      %s88 = scalar_select %p85, %s86, %s87
      %p91 = pneg %p85
      %p92 = scmp.eq.s32.totalorder %s24, 1
      %p93 = por %p91, %p92
      %p94 = scmp.ne.s32.totalorder %s86, %s89
      %p95 = scmp.eq.s32.totalorder %s24, 0
      %p96 = por %p94, %p95
      %p97 = scmp.ne.s32.totalorder %s86, %s89
      %p98 = scmp.eq.s32.totalorder %s29, 1
      %p99 = por %p97, %p98
      %p100 = scmp.ne.s32.totalorder %s89, %s90
      %p101 = scmp.eq.s32.totalorder %s29, 0
      %p102 = por %p100, %p101
      %p103 = scmp.ne.s32.totalorder %s89, %s90
      %p104 = scmp.eq.s32.totalorder %s30, 1
      %p105 = por %p103, %p104
      %p107 = scmp.ne.s32.totalorder %s90, %s106
      %p108 = scmp.eq.s32.totalorder %s30, 0
      %p109 = por %p107, %p108
      %s110 = ssub.s32 %s24, %s31
      %p111 = scmp.eq.s32.totalorder %s110, 0
      %s113 = sadd.s32 %s112, 1
      %s114 = scalar_select %p111, %s112, %s113
      %p117 = pneg %p111
      %p118 = scmp.eq.s32.totalorder %s24, 1
      %p119 = por %p117, %p118
      %p120 = scmp.ne.s32.totalorder %s112, %s115
      %p121 = scmp.eq.s32.totalorder %s24, 0
      %p122 = por %p120, %p121
      %p123 = scmp.ne.s32.totalorder %s112, %s115
      %p124 = scmp.eq.s32.totalorder %s29, 1
      %p125 = por %p123, %p124
      %p126 = scmp.ne.s32.totalorder %s115, %s116
      %p127 = scmp.eq.s32.totalorder %s29, 0
      %p128 = por %p126, %p127
      %p129 = scmp.ne.s32.totalorder %s115, %s116
      %p130 = scmp.eq.s32.totalorder %s30, 1
      %p131 = por %p129, %p130
      %p133 = scmp.ne.s32.totalorder %s116, %s132
      %p134 = scmp.eq.s32.totalorder %s30, 0
      %p135 = por %p133, %p134
      %s137 = sadd.s32 %s136, 1
      %p140 = scmp.eq.s32.totalorder %s24, 1
      %p141 = scmp.ne.s32.totalorder %s136, %s138
      %p142 = scmp.eq.s32.totalorder %s24, 0
      %p143 = por %p141, %p142
      %p144 = scmp.ne.s32.totalorder %s136, %s138
      %p145 = scmp.eq.s32.totalorder %s29, 1
      %p146 = por %p144, %p145
      %p147 = scmp.ne.s32.totalorder %s138, %s139
      %p148 = scmp.eq.s32.totalorder %s29, 0
      %p149 = por %p147, %p148
      %p150 = scmp.ne.s32.totalorder %s138, %s139
      %p151 = scmp.eq.s32.totalorder %s30, 1
      %p152 = por %p150, %p151
      %p154 = scmp.ne.s32.totalorder %s139, %s153
      %p155 = scmp.eq.s32.totalorder %s30, 0
      %p156 = por %p154, %p155
      %s158 = sadd.s32 %s157, 1
      %p161 = scmp.eq.s32.totalorder %s24, 1
      %p162 = scmp.ne.s32.totalorder %s157, %s159
      %p163 = scmp.eq.s32.totalorder %s24, 0
      %p164 = por %p162, %p163
      %p165 = scmp.ne.s32.totalorder %s157, %s159
      %p166 = scmp.eq.s32.totalorder %s29, 1
      %p167 = por %p165, %p166
      %p168 = scmp.ne.s32.totalorder %s159, %s160
      %p169 = scmp.eq.s32.totalorder %s29, 0
      %p170 = por %p168, %p169
      %p171 = scmp.ne.s32.totalorder %s159, %s160
      %p172 = scmp.eq.s32.totalorder %s30, 1
      %p173 = por %p171, %p172
      %p175 = scmp.ne.s32.totalorder %s160, %s174
      %p176 = scmp.eq.s32.totalorder %s30, 0
      %p177 = por %p175, %p176
      %s178 = ssub.s32 %s24, %s31
      %p179 = scmp.eq.s32.totalorder %s178, 0
      %s181 = sadd.s32 %s180, 1
      %s182 = scalar_select %p179, %s180, %s181
      %p185 = pneg %p179
      %p186 = scmp.eq.s32.totalorder %s24, 1
      %p187 = por %p185, %p186
      %p188 = scmp.ne.s32.totalorder %s180, %s183
      %p189 = scmp.eq.s32.totalorder %s24, 0
      %p190 = por %p188, %p189
      %p191 = scmp.ne.s32.totalorder %s180, %s183
      %p192 = scmp.eq.s32.totalorder %s29, 1
      %p193 = por %p191, %p192
      %p194 = scmp.ne.s32.totalorder %s183, %s184
      %p195 = scmp.eq.s32.totalorder %s29, 0
      %p196 = por %p194, %p195
      %p197 = scmp.ne.s32.totalorder %s183, %s184
      %p198 = scmp.eq.s32.totalorder %s30, 1
      %p199 = por %p197, %p198
      %p201 = scmp.ne.s32.totalorder %s184, %s200
      %p202 = scmp.eq.s32.totalorder %s30, 0
      %p203 = por %p201, %p202
      %p204 = scmp.le.s32.totalorder 1, %s24
      %p205 = scmp.lt.s32.totalorder %s24, 3
      %p206 = pnand %p204, %p205
      %p207 = pneg %p206
      // Predicated region
      $region9: #{tpu_custom_call.1} parent=5 // pred_check
        _
      $region10: #{tpu_custom_call.1} parent=5 // pred_check_branch
        %209 = sbr.rel (%p206) target = $region12
      $region11: #{tpu_custom_call.1} parent=5 // pred_region
        %s210 = ssub.s32 %s24, 1
        // Predicated region
        $region13: #{tpu_custom_call.1} parent=11 // pred_check
          %p211 = pneg %p149
        $region14: #{tpu_custom_call.1} parent=11 // pred_check_branch
          %213 = sbr.rel (%p211) target = $region16
        $region15: #{tpu_custom_call.1} parent=11 // pred_region
          %s215 = ssub.s32 4096, 4096
          %216 = vsyncadd [#allocation9], %s215
          %s217 = sshll.u32 [#allocation10], 4
          %s218 = int_to_ptr.vmem [resolvable:$true] %s217
          %223 = dma.hbm_to_vmem [thread:$0]  %s4, 4096, %s218, [#allocation9], 64, 64, 4
        $region16: #{tpu_custom_call.1} parent=11 // pred_fallthru
          _
        // Predicated region
        $region17: #{tpu_custom_call.1} parent=11 // pred_check
          %p224 = pneg %p170
        $region18: #{tpu_custom_call.1} parent=11 // pred_check_branch
          %226 = sbr.rel (%p224) target = $region20
        $region19: #{tpu_custom_call.1} parent=11 // pred_region
          _
        $region20: #{tpu_custom_call.1} parent=11 // pred_fallthru
          _
      $region12: #{tpu_custom_call.1} parent=5 // pred_fallthru
        _
      %p227 = scmp.lt.s32.totalorder %s24, 2
      // Predicated region
      $region21: #{tpu_custom_call.1} parent=5 // pred_check
        %p228 = pneg %p227
      $region22: #{tpu_custom_call.1} parent=5 // pred_check_branch
        %230 = sbr.rel (%p228) target = $region24
      $region23: #{tpu_custom_call.1} parent=5 // pred_region
        // Predicated region
        $region25: #{tpu_custom_call.1} parent=23 // pred_check
          %p231 = pneg %p44
        $region26: #{tpu_custom_call.1} parent=23 // pred_check_branch
          %233 = sbr.rel (%p231) target = $region28
        $region27: #{tpu_custom_call.1} parent=23 // pred_region
          %s234 = sand.u32 %s34, 1
          %s235 = scalar_lea.sflag [#allocation3], %s234
          %s236 = sand.u32 %s34, 1
          %s237 = smul.addr %s236, 8
          %s238 = scalar_lea.vmem [#allocation2], %s237
          %s239 = smul.u32 2, %s24
          %s240 = ssub.s32 3, %s239
          %p241 = scmp.lt.s32.totalorder %s240, 2
          %s242 = scalar_select %p241, %s240, 2
          %s243 = smul.u32 64, %s242
          %s245 = ssub.s32 128, %s243
          %246 = vsyncadd %s235, %s245
          %p247 = scmp.ne.s32.totalorder 0, %s243
          %s248 = smul.addr %s239, 64
          %s249 = scalar_lea.hbm %s0, %s248
          %s250 = smul.u32 4, %s242
          %s251 = sshll.u32 %s238, 4
          %s252 = int_to_ptr.vmem [resolvable:$true] %s251
          %s253 = sshll.u32 %s250, 4
          %257 = dma.hbm_to_vmem [thread:$0]  (%p247), %s249, %s253, %s252, %s235, 64, 64, 4
        $region28: #{tpu_custom_call.1} parent=23 // pred_fallthru
          _
        // Predicated region
        $region29: #{tpu_custom_call.1} parent=23 // pred_check
          %p258 = pneg %p70
        $region30: #{tpu_custom_call.1} parent=23 // pred_check_branch
          %260 = sbr.rel (%p258) target = $region32
        $region31: #{tpu_custom_call.1} parent=23 // pred_region
          %s261 = sand.u32 %s24, 1
          %s262 = scalar_lea.sflag [#allocation6], %s261
          %s263 = sand.u32 %s60, 1
          %s264 = smul.addr %s263, 8
          %s265 = scalar_lea.vmem [#allocation5], %s264
          %s266 = smul.u32 2, %s24
          %s267 = ssub.s32 3, %s266
          %p268 = scmp.lt.s32.totalorder %s267, 2
          %s269 = scalar_select %p268, %s267, 2
          %s270 = smul.u32 64, %s269
          %s272 = ssub.s32 128, %s270
          %273 = vsyncadd %s262, %s272
          %p274 = scmp.ne.s32.totalorder 0, %s270
          %s275 = smul.addr %s266, 64
          %s276 = scalar_lea.hbm %s1, %s275
          %s277 = smul.u32 4, %s269
          %s278 = sshll.u32 %s265, 4
          %s279 = int_to_ptr.vmem [resolvable:$true] %s278
          %s280 = sshll.u32 %s277, 4
          %284 = dma.hbm_to_vmem [thread:$0]  (%p274), %s276, %s280, %s279, %s262, 64, 64, 4
        $region32: #{tpu_custom_call.1} parent=23 // pred_fallthru
          _
        // Predicated region
        $region33: #{tpu_custom_call.1} parent=23 // pred_check
          %p285 = pneg %p96
        $region34: #{tpu_custom_call.1} parent=23 // pred_check_branch
          %287 = sbr.rel (%p285) target = $region36
        $region35: #{tpu_custom_call.1} parent=23 // pred_region
          %s288 = sand.u32 %s24, 1
          %s289 = scalar_lea.sflag [#allocation6], %s288
          %s290 = sand.u32 %s86, 1
          %s291 = smul.addr %s290, 8
          %s292 = scalar_lea.vmem [#allocation7], %s291
          %s293 = smul.u32 2, %s24
          %s294 = ssub.s32 3, %s293
          %p295 = scmp.lt.s32.totalorder %s294, 2
          %s296 = scalar_select %p295, %s294, 2
          %s297 = smul.u32 64, %s296
          %s299 = ssub.s32 128, %s297
          %300 = vsyncadd %s289, %s299
          %p301 = scmp.ne.s32.totalorder 0, %s297
          %s302 = smul.addr %s293, 64
          %s303 = scalar_lea.hbm %s2, %s302
          %s304 = smul.u32 4, %s296
          %s305 = sshll.u32 %s292, 4
          %s306 = int_to_ptr.vmem [resolvable:$true] %s305
          %s307 = sshll.u32 %s304, 4
          %311 = dma.hbm_to_vmem [thread:$0]  (%p301), %s303, %s307, %s306, %s289, 64, 64, 4
        $region36: #{tpu_custom_call.1} parent=23 // pred_fallthru
          _
        // Predicated region
        $region37: #{tpu_custom_call.1} parent=23 // pred_check
          %p312 = pneg %p122
        $region38: #{tpu_custom_call.1} parent=23 // pred_check_branch
          %314 = sbr.rel (%p312) target = $region40
        $region39: #{tpu_custom_call.1} parent=23 // pred_region
          %s315 = sand.u32 %s24, 1
          %s316 = scalar_lea.sflag [#allocation9], %s315
          %s317 = sand.u32 %s112, 1
          %s318 = smul.addr %s317, 8
          %s319 = scalar_lea.vmem [#allocation8], %s318
          %s320 = smul.u32 2, %s24
          %s321 = ssub.s32 3, %s320
          %p322 = scmp.lt.s32.totalorder %s321, 2
          %s323 = scalar_select %p322, %s321, 2
          %s324 = smul.u32 64, %s323
          %s326 = ssub.s32 128, %s324
          %327 = vsyncadd %s316, %s326
          %p328 = scmp.ne.s32.totalorder 0, %s324
          %s329 = smul.addr %s320, 64
          %s330 = scalar_lea.hbm %s3, %s329
          %s331 = smul.u32 4, %s323
          %s332 = sshll.u32 %s319, 4
          %s333 = int_to_ptr.vmem [resolvable:$true] %s332
          %s334 = sshll.u32 %s331, 4
          %338 = dma.hbm_to_vmem [thread:$0]  (%p328), %s330, %s334, %s333, %s316, 64, 64, 4
        $region40: #{tpu_custom_call.1} parent=23 // pred_fallthru
          _
      $region24: #{tpu_custom_call.1} parent=5 // pred_fallthru
        _
      %p339 = scmp.le.s32.totalorder 1, %s24
      %p340 = scmp.lt.s32.totalorder %s24, 3
      %p341 = pnand %p339, %p340
      %p342 = pneg %p341
      // Predicated region
      $region41: #{tpu_custom_call.1} parent=5 // pred_check
        _
      $region42: #{tpu_custom_call.1} parent=5 // pred_check_branch
        %344 = sbr.rel (%p341) target = $region44
      $region43: #{tpu_custom_call.1} parent=5 // pred_region
        %s345 = ssub.s32 %s24, 1
        %s346 = sand.u32 %s37, 1
        %s347 = scalar_lea.sflag [#allocation3], %s346
        %s348 = sand.u32 %s37, 1
        %s349 = smul.addr %s348, 8
        %s350 = scalar_lea.vmem [#allocation2], %s349
        // Predicated region
        $region45: #{tpu_custom_call.1} parent=43 // pred_check
          %p351 = pneg %p50
        $region46: #{tpu_custom_call.1} parent=43 // pred_check_branch
          %353 = sbr.rel (%p351) target = $region48
        $region47: #{tpu_custom_call.1} parent=43 // pred_region
          %354 = dma.done %s347, 128
        $region48: #{tpu_custom_call.1} parent=43 // pred_fallthru
          _
        %s355 = sand.u32 %s29, 1
        %s356 = scalar_lea.sflag [#allocation6], %s355
        %s357 = sand.u32 %s63, 1
        %s358 = smul.addr %s357, 8
        %s359 = scalar_lea.vmem [#allocation5], %s358
        // Predicated region
        $region49: #{tpu_custom_call.1} parent=43 // pred_check
          %p360 = pneg %p76
        $region50: #{tpu_custom_call.1} parent=43 // pred_check_branch
          %362 = sbr.rel (%p360) target = $region52
        $region51: #{tpu_custom_call.1} parent=43 // pred_region
          %363 = dma.done %s356, 128
        $region52: #{tpu_custom_call.1} parent=43 // pred_fallthru
          _
        %s364 = sand.u32 %s29, 1
        %s365 = scalar_lea.sflag [#allocation6], %s364
        %s366 = sand.u32 %s89, 1
        %s367 = smul.addr %s366, 8
        %s368 = scalar_lea.vmem [#allocation7], %s367
        // Predicated region
        $region53: #{tpu_custom_call.1} parent=43 // pred_check
          %p369 = pneg %p102
        $region54: #{tpu_custom_call.1} parent=43 // pred_check_branch
          %371 = sbr.rel (%p369) target = $region56
        $region55: #{tpu_custom_call.1} parent=43 // pred_region
          %372 = dma.done %s365, 128
        $region56: #{tpu_custom_call.1} parent=43 // pred_fallthru
          _
        %s373 = sand.u32 %s29, 1
        %s374 = scalar_lea.sflag [#allocation9], %s373
        %s375 = sand.u32 %s115, 1
        %s376 = smul.addr %s375, 8
        %s377 = scalar_lea.vmem [#allocation8], %s376
        // Predicated region
        $region57: #{tpu_custom_call.1} parent=43 // pred_check
          %p378 = pneg %p128
        $region58: #{tpu_custom_call.1} parent=43 // pred_check_branch
          %380 = sbr.rel (%p378) target = $region60
        $region59: #{tpu_custom_call.1} parent=43 // pred_region
          %381 = dma.done %s374, 128
        $region60: #{tpu_custom_call.1} parent=43 // pred_fallthru
          _
        // Predicated region
        $region61: #{tpu_custom_call.1} parent=43 // pred_check
          %p382 = pneg %p149
        $region62: #{tpu_custom_call.1} parent=43 // pred_check_branch
          %384 = sbr.rel (%p382) target = $region64
        $region63: #{tpu_custom_call.1} parent=43 // pred_region
          %385 = dma.done [#allocation9], 4096
        $region64: #{tpu_custom_call.1} parent=43 // pred_fallthru
          _
        %s386 = sand.u32 %s37, 1
        %s387 = scalar_lea.sflag [#allocation3], %s386
        %s388 = sand.u32 %s37, 1
        %s389 = smul.addr %s388, 8
        %s390 = scalar_lea.vmem [#allocation2], %s389
        %p391 = pneg %p50
        %p392 = pneg %p47
        %s393 = sand.u32 %s29, 1
        %s394 = scalar_lea.sflag [#allocation6], %s393
        %s395 = sand.u32 %s63, 1
        %s396 = smul.addr %s395, 8
        %s397 = scalar_lea.vmem [#allocation5], %s396
        %p398 = pneg %p76
        %p399 = pneg %p73
        %s400 = sand.u32 %s29, 1
        %s401 = scalar_lea.sflag [#allocation6], %s400
        %s402 = sand.u32 %s89, 1
        %s403 = smul.addr %s402, 8
        %s404 = scalar_lea.vmem [#allocation7], %s403
        %p405 = pneg %p102
        %p406 = pneg %p99
        %s407 = sand.u32 %s29, 1
        %s408 = scalar_lea.sflag [#allocation9], %s407
        %s409 = sand.u32 %s115, 1
        %s410 = smul.addr %s409, 8
        %s411 = scalar_lea.vmem [#allocation8], %s410
        %p412 = pneg %p128
        %p413 = pneg %p125
        %p414 = pneg %p149
        %p415 = pneg %p146
        %p416 = pneg %p170
        %p417 = pneg %p167
        %p418 = pneg %p196
        %p419 = pneg %p193
        %s420 = sand.u32 %s183, 1
        %s421 = scalar_lea.sflag [#allocation4], %s420
        %s422 = sand.u32 %s183, 1
        %s423 = smul.addr %s422, 16
        %s424 = scalar_lea.vmem [#allocation11], %s423
        %s425 = smul.u32 2, %s29
        %s426 = ssub.s32 3, %s425
        %p427 = scmp.lt.s32.totalorder %s426, 2
        %s428 = scalar_select %p427, %s426, 2
        %s429 = smul.u32 64, %s428
        %s430 = smul.u32 2, %s29
        %s431 = ssub.s32 3, %s430
        %p432 = scmp.lt.s32.totalorder %s431, 2
        %s433 = scalar_select %p432, %s431, 2
        %s434 = smul.u32 64, %s433
        %s435 = smul.u32 2, %s29
        %s436 = ssub.s32 3, %s435
        %p437 = scmp.lt.s32.totalorder %s436, 2
        %s438 = scalar_select %p437, %s436, 2
        %s439 = smul.u32 64, %s438
        %s440 = smul.u32 2, %s29
        %s441 = ssub.s32 3, %s440
        %p442 = scmp.lt.s32.totalorder %s441, 2
        %s443 = scalar_select %p442, %s441, 2
        %s444 = smul.u32 64, %s443
        %s445 = smul.u32 2, %s29
        %s446 = ssub.s32 3, %s445
        %p447 = scmp.lt.s32.totalorder %s446, 2
        %s448 = scalar_select %p447, %s446, 2
        %s449 = smul.u32 128, %s448
        %v451 = vld [vmem:[%s350] sm:$0xf]
        %v452 = vld [vmem:[%s350 + $0x4] sm:$0xf]
        %v453 = vld [vmem:[#allocation10] sm:$0xf]
        %v454 = vld [vmem:[#allocation10 + $0x4] sm:$0xf]
        %v455 = vld [vmem:[#allocation10 + $0x8] sm:$0xf]
        %v456 = vld [vmem:[#allocation10 + $0xc] sm:$0xf]
        %v457 = vld [vmem:[#allocation10 + $0x10] sm:$0xf]
        %v458 = vld [vmem:[#allocation10 + $0x14] sm:$0xf]
        %v459 = vld [vmem:[#allocation10 + $0x18] sm:$0xf]
        %v460 = vld [vmem:[#allocation10 + $0x1c] sm:$0xf]
        %v461 = vld [vmem:[#allocation10 + $0x20] sm:$0xf]
        %v462 = vld [vmem:[#allocation10 + $0x24] sm:$0xf]
        %v463 = vld [vmem:[#allocation10 + $0x28] sm:$0xf]
        %v464 = vld [vmem:[#allocation10 + $0x2c] sm:$0xf]
        %v465 = vld [vmem:[#allocation10 + $0x30] sm:$0xf]
        %v466 = vld [vmem:[#allocation10 + $0x34] sm:$0xf]
        %v467 = vld [vmem:[#allocation10 + $0x38] sm:$0xf]
        %v468 = vld [vmem:[#allocation10 + $0x3c] sm:$0xf]
        %v469 = vld [vmem:[%s359] sm:$0xf]
        %v470 = vld [vmem:[%s359 + $0x4] sm:$0xf]
        %s471 = scalar_lea.vmem [#allocation10], 64
        %v472 = vld [vmem:[%s471] sm:$0xf]
        %v473 = vld [vmem:[%s471 + $0x4] sm:$0xf]
        %v474 = vld [vmem:[%s471 + $0x8] sm:$0xf]
        %v475 = vld [vmem:[%s471 + $0xc] sm:$0xf]
        %v476 = vld [vmem:[%s471 + $0x10] sm:$0xf]
        %v477 = vld [vmem:[%s471 + $0x14] sm:$0xf]
        %v478 = vld [vmem:[%s471 + $0x18] sm:$0xf]
        %v479 = vld [vmem:[%s471 + $0x1c] sm:$0xf]
        %v480 = vld [vmem:[%s471 + $0x20] sm:$0xf]
        %v481 = vld [vmem:[%s471 + $0x24] sm:$0xf]
        %v482 = vld [vmem:[%s471 + $0x28] sm:$0xf]
        %v483 = vld [vmem:[%s471 + $0x2c] sm:$0xf]
        %v484 = vld [vmem:[%s471 + $0x30] sm:$0xf]
        %v485 = vld [vmem:[%s471 + $0x34] sm:$0xf]
        %v486 = vld [vmem:[%s471 + $0x38] sm:$0xf]
        %v487 = vld [vmem:[%s471 + $0x3c] sm:$0xf]
        %v490 = vunpack.c.l.b16 %v469
        %v491 = vunpack.c.l.b16 %v470
        %v492 = vpack.c.b16 %v491, %v490
        %v510 = vunpack.c.l.b16 %v472
        %v511 = vunpack.c.l.b16 %v473
        %v512 = vunpack.c.l.b16 %v474
        %v513 = vunpack.c.l.b16 %v475
        %v514 = vunpack.c.l.b16 %v476
        %v515 = vunpack.c.l.b16 %v477
        %v516 = vunpack.c.l.b16 %v478
        %v517 = vunpack.c.l.b16 %v479
        %v518 = vunpack.c.l.b16 %v480
        %v519 = vunpack.c.l.b16 %v481
        %v520 = vunpack.c.l.b16 %v482
        %v521 = vunpack.c.l.b16 %v483
        %v522 = vunpack.c.l.b16 %v484
        %v523 = vunpack.c.l.b16 %v485
        %v524 = vunpack.c.l.b16 %v486
        %v525 = vunpack.c.l.b16 %v487
        %v526 = vpack.c.b16 %v511, %v510
        %v527 = vpack.c.b16 %v513, %v512
        %v528 = vpack.c.b16 %v515, %v514
        %v529 = vpack.c.b16 %v517, %v516
        %v530 = vpack.c.b16 %v519, %v518
        %v531 = vpack.c.b16 %v521, %v520
        %v532 = vpack.c.b16 %v523, %v522
        %v533 = vpack.c.b16 %v525, %v524
        %542 = vmatprep.subr.bf16.mxu0 0
        %543 = vmatpush1.bf16.msra.mxu0 %v533
        %544 = vmatprep.subr.bf16.mxu0 0
        %545 = vmatpush1.bf16.msra.mxu0 %v532
        %546 = vmatprep.subr.bf16.mxu0 0
        %547 = vmatpush1.bf16.msra.mxu0 %v531
        %548 = vmatprep.subr.bf16.mxu0 0
        %549 = vmatpush1.bf16.msra.mxu0 %v530
        %550 = vmatprep.subr.bf16.mxu0 0
        %551 = vmatpush1.bf16.msra.mxu0 %v529
        %552 = vmatprep.subr.bf16.mxu0 0
        %553 = vmatpush1.bf16.msra.mxu0 %v528
        %554 = vmatprep.subr.bf16.mxu0 0
        %555 = vmatpush1.bf16.msra.mxu0 %v527
        %556 = vmatprep.subr.bf16.mxu0 0
        %557 = vmatpush1.bf16.msra.mxu0 %v526
        %558 = vmatprep.subr.bf16.mxu0 0
        %559 = vmatpush2.bf16.msra.mxu0 0
        %560 = vmatprep.subr.bf16.mxu0 0
        %561 = vmatpush2.bf16.msra.mxu0 0
        %562 = vmatprep.subr.bf16.mxu0 0
        %563 = vmatpush2.bf16.msra.mxu0 0
        %564 = vmatprep.subr.bf16.mxu0 0
        %565 = vmatpush2.bf16.msra.mxu0 0
        %566 = vmatprep.subr.bf16.mxu0 0
        %567 = vmatpush2.bf16.msra.mxu0 0
        %568 = vmatprep.subr.bf16.mxu0 0
        %569 = vmatpush2.bf16.msra.mxu0 0
        %570 = vmatprep.subr.bf16.mxu0 0
        %571 = vmatpush2.bf16.msra.mxu0 0
        %572 = vmatprep.subr.bf16.mxu0 0
        %573 = vmatpush2.bf16.msra.mxu0 0
        %574 = vmatprep.mubr.bf16.mxu0 0
        %575 = vmatmul.mubr.bf16.gmra.mxu0 %v492
        %v576 = vpop.f32.mrf.mxu0
        %v577 = vadd.f32 0.0, %v576
        %v578 = vpop.f32.mrf.mxu0
        %v579 = vpop.f32.mrf.mxu0
        %v580 = vadd.f32 0.0, %v579
        %v581 = vpop.f32.mrf.mxu0
        %582 = vdwg.mxu0
        %v585 = vunpack.c.l.b16 %v451
        %v586 = vunpack.c.l.b16 %v452
        %v587 = vpack.c.b16 %v586, %v585
        %v605 = vunpack.c.l.b16 %v453
        %v606 = vunpack.c.l.b16 %v454
        %v607 = vunpack.c.l.b16 %v455
        %v608 = vunpack.c.l.b16 %v456
        %v609 = vunpack.c.l.b16 %v457
        %v610 = vunpack.c.l.b16 %v458
        %v611 = vunpack.c.l.b16 %v459
        %v612 = vunpack.c.l.b16 %v460
        %v613 = vunpack.c.l.b16 %v461
        %v614 = vunpack.c.l.b16 %v462
        %v615 = vunpack.c.l.b16 %v463
        %v616 = vunpack.c.l.b16 %v464
        %v617 = vunpack.c.l.b16 %v465
        %v618 = vunpack.c.l.b16 %v466
        %v619 = vunpack.c.l.b16 %v467
        %v620 = vunpack.c.l.b16 %v468
        %v621 = vpack.c.b16 %v606, %v605
        %v622 = vpack.c.b16 %v608, %v607
        %v623 = vpack.c.b16 %v610, %v609
        %v624 = vpack.c.b16 %v612, %v611
        %v625 = vpack.c.b16 %v614, %v613
        %v626 = vpack.c.b16 %v616, %v615
        %v627 = vpack.c.b16 %v618, %v617
        %v628 = vpack.c.b16 %v620, %v619
        %637 = vmatprep.subr.bf16.mxu0 0
        %638 = vmatpush1.bf16.msra.mxu0 %v628
        %639 = vmatprep.subr.bf16.mxu0 0
        %640 = vmatpush1.bf16.msra.mxu0 %v627
        %641 = vmatprep.subr.bf16.mxu0 0
        %642 = vmatpush1.bf16.msra.mxu0 %v626
        %643 = vmatprep.subr.bf16.mxu0 0
        %644 = vmatpush1.bf16.msra.mxu0 %v625
        %645 = vmatprep.subr.bf16.mxu0 0
        %646 = vmatpush1.bf16.msra.mxu0 %v624
        %647 = vmatprep.subr.bf16.mxu0 0
        %648 = vmatpush1.bf16.msra.mxu0 %v623
        %649 = vmatprep.subr.bf16.mxu0 0
        %650 = vmatpush1.bf16.msra.mxu0 %v622
        %651 = vmatprep.subr.bf16.mxu0 0
        %652 = vmatpush1.bf16.msra.mxu0 %v621
        %653 = vmatprep.subr.bf16.mxu0 0
        %654 = vmatpush2.bf16.msra.mxu0 0
        %655 = vmatprep.subr.bf16.mxu0 0
        %656 = vmatpush2.bf16.msra.mxu0 0
        %657 = vmatprep.subr.bf16.mxu0 0
        %658 = vmatpush2.bf16.msra.mxu0 0
        %659 = vmatprep.subr.bf16.mxu0 0
        %660 = vmatpush2.bf16.msra.mxu0 0
        %661 = vmatprep.subr.bf16.mxu0 0
        %662 = vmatpush2.bf16.msra.mxu0 0
        %663 = vmatprep.subr.bf16.mxu0 0
        %664 = vmatpush2.bf16.msra.mxu0 0
        %665 = vmatprep.subr.bf16.mxu0 0
        %666 = vmatpush2.bf16.msra.mxu0 0
        %667 = vmatprep.subr.bf16.mxu0 0
        %668 = vmatpush2.bf16.msra.mxu0 0
        %669 = vmatprep.mubr.bf16.mxu0 0
        %670 = vmatmul.mubr.bf16.gmra.mxu0 %v587
        %v671 = vpop.f32.mrf.mxu0
        %v672 = vadd.f32 %v577, %v671
        %v673 = vpop.f32.mrf.mxu0
        %v674 = vpop.f32.mrf.mxu0
        %v675 = vadd.f32 %v580, %v674
        %v676 = vpop.f32.mrf.mxu0
        %677 = vdwg.mxu0
        %v678 = vld [vmem:[%s368] sm:$0xf]
        %v679 = vld [vmem:[%s368 + $0x4] sm:$0xf]
        %s680 = scalar_lea.vmem [#allocation10], 128
        %v681 = vld [vmem:[%s680] sm:$0xf]
        %v682 = vld [vmem:[%s680 + $0x4] sm:$0xf]
        %v683 = vld [vmem:[%s680 + $0x8] sm:$0xf]
        %v684 = vld [vmem:[%s680 + $0xc] sm:$0xf]
        %v685 = vld [vmem:[%s680 + $0x10] sm:$0xf]
        %v686 = vld [vmem:[%s680 + $0x14] sm:$0xf]
        %v687 = vld [vmem:[%s680 + $0x18] sm:$0xf]
        %v688 = vld [vmem:[%s680 + $0x1c] sm:$0xf]
        %v689 = vld [vmem:[%s680 + $0x20] sm:$0xf]
        %v690 = vld [vmem:[%s680 + $0x24] sm:$0xf]
        %v691 = vld [vmem:[%s680 + $0x28] sm:$0xf]
        %v692 = vld [vmem:[%s680 + $0x2c] sm:$0xf]
        %v693 = vld [vmem:[%s680 + $0x30] sm:$0xf]
        %v694 = vld [vmem:[%s680 + $0x34] sm:$0xf]
        %v695 = vld [vmem:[%s680 + $0x38] sm:$0xf]
        %v696 = vld [vmem:[%s680 + $0x3c] sm:$0xf]
        %v699 = vunpack.c.l.b16 %v678
        %v700 = vunpack.c.l.b16 %v679
        %v701 = vpack.c.b16 %v700, %v699
        %v719 = vunpack.c.l.b16 %v681
        %v720 = vunpack.c.l.b16 %v682
        %v721 = vunpack.c.l.b16 %v683
        %v722 = vunpack.c.l.b16 %v684
        %v723 = vunpack.c.l.b16 %v685
        %v724 = vunpack.c.l.b16 %v686
        %v725 = vunpack.c.l.b16 %v687
        %v726 = vunpack.c.l.b16 %v688
        %v727 = vunpack.c.l.b16 %v689
        %v728 = vunpack.c.l.b16 %v690
        %v729 = vunpack.c.l.b16 %v691
        %v730 = vunpack.c.l.b16 %v692
        %v731 = vunpack.c.l.b16 %v693
        %v732 = vunpack.c.l.b16 %v694
        %v733 = vunpack.c.l.b16 %v695
        %v734 = vunpack.c.l.b16 %v696
        %v735 = vpack.c.b16 %v720, %v719
        %v736 = vpack.c.b16 %v722, %v721
        %v737 = vpack.c.b16 %v724, %v723
        %v738 = vpack.c.b16 %v726, %v725
        %v739 = vpack.c.b16 %v728, %v727
        %v740 = vpack.c.b16 %v730, %v729
        %v741 = vpack.c.b16 %v732, %v731
        %v742 = vpack.c.b16 %v734, %v733
        %751 = vmatprep.subr.bf16.mxu0 0
        %752 = vmatpush1.bf16.msra.mxu0 %v742
        %753 = vmatprep.subr.bf16.mxu0 0
        %754 = vmatpush1.bf16.msra.mxu0 %v741
        %755 = vmatprep.subr.bf16.mxu0 0
        %756 = vmatpush1.bf16.msra.mxu0 %v740
        %757 = vmatprep.subr.bf16.mxu0 0
        %758 = vmatpush1.bf16.msra.mxu0 %v739
        %759 = vmatprep.subr.bf16.mxu0 0
        %760 = vmatpush1.bf16.msra.mxu0 %v738
        %761 = vmatprep.subr.bf16.mxu0 0
        %762 = vmatpush1.bf16.msra.mxu0 %v737
        %763 = vmatprep.subr.bf16.mxu0 0
        %764 = vmatpush1.bf16.msra.mxu0 %v736
        %765 = vmatprep.subr.bf16.mxu0 0
        %766 = vmatpush1.bf16.msra.mxu0 %v735
        %767 = vmatprep.subr.bf16.mxu0 0
        %768 = vmatpush2.bf16.msra.mxu0 0
        %769 = vmatprep.subr.bf16.mxu0 0
        %770 = vmatpush2.bf16.msra.mxu0 0
        %771 = vmatprep.subr.bf16.mxu0 0
        %772 = vmatpush2.bf16.msra.mxu0 0
        %773 = vmatprep.subr.bf16.mxu0 0
        %774 = vmatpush2.bf16.msra.mxu0 0
        %775 = vmatprep.subr.bf16.mxu0 0
        %776 = vmatpush2.bf16.msra.mxu0 0
        %777 = vmatprep.subr.bf16.mxu0 0
        %778 = vmatpush2.bf16.msra.mxu0 0
        %779 = vmatprep.subr.bf16.mxu0 0
        %780 = vmatpush2.bf16.msra.mxu0 0
        %781 = vmatprep.subr.bf16.mxu0 0
        %782 = vmatpush2.bf16.msra.mxu0 0
        %783 = vmatprep.mubr.bf16.mxu0 0
        %784 = vmatmul.mubr.bf16.gmra.mxu0 %v701
        %v785 = vpop.f32.mrf.mxu0
        %v786 = vadd.f32 0.0, %v785
        %v787 = vpop.f32.mrf.mxu0
        %v788 = vpop.f32.mrf.mxu0
        %v789 = vadd.f32 0.0, %v788
        %v790 = vpop.f32.mrf.mxu0
        %791 = vdwg.mxu0
        %v792 = vadd.f32 %v672, %v786
        %v793 = vadd.f32 %v675, %v789
        %v794 = vld [vmem:[%s377] sm:$0xf]
        %v795 = vld [vmem:[%s377 + $0x4] sm:$0xf]
        %s796 = scalar_lea.vmem [#allocation10], 192
        %v797 = vld [vmem:[%s796] sm:$0xf]
        %v798 = vld [vmem:[%s796 + $0x4] sm:$0xf]
        %v799 = vld [vmem:[%s796 + $0x8] sm:$0xf]
        %v800 = vld [vmem:[%s796 + $0xc] sm:$0xf]
        %v801 = vld [vmem:[%s796 + $0x10] sm:$0xf]
        %v802 = vld [vmem:[%s796 + $0x14] sm:$0xf]
        %v803 = vld [vmem:[%s796 + $0x18] sm:$0xf]
        %v804 = vld [vmem:[%s796 + $0x1c] sm:$0xf]
        %v805 = vld [vmem:[%s796 + $0x20] sm:$0xf]
        %v806 = vld [vmem:[%s796 + $0x24] sm:$0xf]
        %v807 = vld [vmem:[%s796 + $0x28] sm:$0xf]
        %v808 = vld [vmem:[%s796 + $0x2c] sm:$0xf]
        %v809 = vld [vmem:[%s796 + $0x30] sm:$0xf]
        %v810 = vld [vmem:[%s796 + $0x34] sm:$0xf]
        %v811 = vld [vmem:[%s796 + $0x38] sm:$0xf]
        %v812 = vld [vmem:[%s796 + $0x3c] sm:$0xf]
        %v815 = vunpack.c.l.b16 %v794
        %v816 = vunpack.c.l.b16 %v795
        %v817 = vpack.c.b16 %v816, %v815
        %v835 = vunpack.c.l.b16 %v797
        %v836 = vunpack.c.l.b16 %v798
        %v837 = vunpack.c.l.b16 %v799
        %v838 = vunpack.c.l.b16 %v800
        %v839 = vunpack.c.l.b16 %v801
        %v840 = vunpack.c.l.b16 %v802
        %v841 = vunpack.c.l.b16 %v803
        %v842 = vunpack.c.l.b16 %v804
        %v843 = vunpack.c.l.b16 %v805
        %v844 = vunpack.c.l.b16 %v806
        %v845 = vunpack.c.l.b16 %v807
        %v846 = vunpack.c.l.b16 %v808
        %v847 = vunpack.c.l.b16 %v809
        %v848 = vunpack.c.l.b16 %v810
        %v849 = vunpack.c.l.b16 %v811
        %v850 = vunpack.c.l.b16 %v812
        %v851 = vpack.c.b16 %v836, %v835
        %v852 = vpack.c.b16 %v838, %v837
        %v853 = vpack.c.b16 %v840, %v839
        %v854 = vpack.c.b16 %v842, %v841
        %v855 = vpack.c.b16 %v844, %v843
        %v856 = vpack.c.b16 %v846, %v845
        %v857 = vpack.c.b16 %v848, %v847
        %v858 = vpack.c.b16 %v850, %v849
        %867 = vmatprep.subr.bf16.mxu0 0
        %868 = vmatpush1.bf16.msra.mxu0 %v858
        %869 = vmatprep.subr.bf16.mxu0 0
        %870 = vmatpush1.bf16.msra.mxu0 %v857
        %871 = vmatprep.subr.bf16.mxu0 0
        %872 = vmatpush1.bf16.msra.mxu0 %v856
        %873 = vmatprep.subr.bf16.mxu0 0
        %874 = vmatpush1.bf16.msra.mxu0 %v855
        %875 = vmatprep.subr.bf16.mxu0 0
        %876 = vmatpush1.bf16.msra.mxu0 %v854
        %877 = vmatprep.subr.bf16.mxu0 0
        %878 = vmatpush1.bf16.msra.mxu0 %v853
        %879 = vmatprep.subr.bf16.mxu0 0
        %880 = vmatpush1.bf16.msra.mxu0 %v852
        %881 = vmatprep.subr.bf16.mxu0 0
        %882 = vmatpush1.bf16.msra.mxu0 %v851
        %883 = vmatprep.subr.bf16.mxu0 0
        %884 = vmatpush2.bf16.msra.mxu0 0
        %885 = vmatprep.subr.bf16.mxu0 0
        %886 = vmatpush2.bf16.msra.mxu0 0
        %887 = vmatprep.subr.bf16.mxu0 0
        %888 = vmatpush2.bf16.msra.mxu0 0
        %889 = vmatprep.subr.bf16.mxu0 0
        %890 = vmatpush2.bf16.msra.mxu0 0
        %891 = vmatprep.subr.bf16.mxu0 0
        %892 = vmatpush2.bf16.msra.mxu0 0
        %893 = vmatprep.subr.bf16.mxu0 0
        %894 = vmatpush2.bf16.msra.mxu0 0
        %895 = vmatprep.subr.bf16.mxu0 0
        %896 = vmatpush2.bf16.msra.mxu0 0
        %897 = vmatprep.subr.bf16.mxu0 0
        %898 = vmatpush2.bf16.msra.mxu0 0
        %899 = vmatprep.mubr.bf16.mxu0 0
        %900 = vmatmul.mubr.bf16.gmra.mxu0 %v817
        %v901 = vpop.f32.mrf.mxu0
        %v902 = vadd.f32 0.0, %v901
        %v903 = vpop.f32.mrf.mxu0
        %v904 = vpop.f32.mrf.mxu0
        %v905 = vadd.f32 0.0, %v904
        %v906 = vpop.f32.mrf.mxu0
        %907 = vdwg.mxu0
        %v908 = vadd.f32 %v792, %v902
        %v909 = vadd.f32 %v793, %v905
        %v910 = vld [vmem:[%s5] sm:$0x1]
        %v912 = vlaneseq
        %v913 = vshrl.u32 %v912, 7
        %v914 = vsub.s32 0, %v913
        %v915 = vrot.slane %v910, %v914
        %v917 = vadd.f32 %v908, %v915
        %v918 = vadd.f32 %v909, %v915
        %919 = vst [vmem:[%s424] sm:$0xff] %v917
        %920 = vst [vmem:[%s424 + $0x8] sm:$0xff] %v918
        %s921 = sand.u32 %s183, 1
        %s922 = scalar_lea.sflag [#allocation4], %s921
        %s923 = sand.u32 %s183, 1
        %s924 = smul.addr %s923, 16
        %s925 = scalar_lea.vmem [#allocation11], %s924
        // Predicated region
        $region65: #{tpu_custom_call.1} parent=43 // pred_check
          %p926 = pneg %p193
        $region66: #{tpu_custom_call.1} parent=43 // pred_check_branch
          %928 = sbr.rel (%p926) target = $region68
        $region67: #{tpu_custom_call.1} parent=43 // pred_region
          %s929 = smul.u32 2, %s29
          %s930 = ssub.s32 3, %s929
          %p931 = scmp.lt.s32.totalorder %s930, 2
          %s932 = scalar_select %p931, %s930, 2
          %s933 = smul.u32 128, %s932
          %s935 = ssub.s32 256, %s933
          %936 = vsyncadd %s922, %s935
          %p937 = scmp.ne.s32.totalorder 0, %s933
          %s938 = smul.addr %s929, 128
          %s939 = scalar_lea.hbm %s6, %s938
          %s940 = smul.u32 8, %s932
          %s941 = sshll.u32 %s925, 4
          %s942 = int_to_ptr.vmem [resolvable:$true] %s941
          %s943 = sshll.u32 %s940, 4
          %947 = dma.vmem_to_hbm [thread:$0]  (%p937), %s942, %s943, %s939, %s922, 128, 128, 8
        $region68: #{tpu_custom_call.1} parent=43 // pred_fallthru
          _
      $region44: #{tpu_custom_call.1} parent=5 // pred_fallthru
        _
      %p948 = scmp.le.s32.totalorder 2, %s24
      // Predicated region
      $region69: #{tpu_custom_call.1} parent=5 // pred_check
        %p949 = pneg %p948
      $region70: #{tpu_custom_call.1} parent=5 // pred_check_branch
        %951 = sbr.rel (%p949) target = $region72
      $region71: #{tpu_custom_call.1} parent=5 // pred_region
        %s952 = ssub.s32 %s24, 2
        // Predicated region
        $region73: #{tpu_custom_call.1} parent=71 // pred_check
          %p953 = pneg %p199
        $region74: #{tpu_custom_call.1} parent=71 // pred_check_branch
          %955 = sbr.rel (%p953) target = $region76
        $region75: #{tpu_custom_call.1} parent=71 // pred_region
          %s956 = sand.u32 %s184, 1
          %s957 = scalar_lea.sflag [#allocation4], %s956
          %s958 = sand.u32 %s184, 1
          %s959 = smul.addr %s958, 16
          %s960 = scalar_lea.vmem [#allocation11], %s959
          %961 = dma.done %s957, 256
        $region76: #{tpu_custom_call.1} parent=71 // pred_fallthru
          _
      $region72: #{tpu_custom_call.1} parent=5 // pred_fallthru
        _
    $region6: #{tpu_custom_call.1} parent=1 // loop_footer
      %s28 = sadd.s32 1, %s24
    $region7: #{tpu_custom_call.1} parent=1 // loop_footer_branch
      %23 = sbr.rel target = $region3
    $region8: #{tpu_custom_call.1} parent=1 // loop_exit
      _
    %962 = vsyncpa [#allocation3], 1
    %s963 = scalar_lea.sflag [#allocation3], 1
    %964 = vsyncpa %s963, 1
    %965 = vsyncpa [#allocation6], 1
    %s966 = scalar_lea.sflag [#allocation6], 1
    %967 = vsyncpa %s966, 1
    %968 = vsyncpa [#allocation9], 1
    %s969 = scalar_lea.sflag [#allocation9], 1
    %970 = vsyncpa %s969, 1
    %971 = vsyncpa [#allocation4], 1
    %s972 = scalar_lea.sflag [#allocation4], 1
    %973 = vsyncpa %s972, 1

</llo_original>
